<compile_context>
chip_gen: v7x
topology: tpu7x:2x2x1
jax: 0.10.0
libtpu: 0.0.40
codegen_flags: <defaults>
</compile_context>

<pallas_src>
import math

import jax
import jax.numpy as jnp
from jax.experimental import pallas as pl
from jax.experimental.pallas import tpu as pltpu


def _feature_stacking_kernel(a_ref, b_ref, o_ref):
    # max over the stacked (size-2) axis == elementwise maximum.
    o_ref[...] = jnp.maximum(a_ref[...], b_ref[...])


def _round_up(x, m):
    return ((x + m - 1) // m) * m


def _round_down(x, m):
    return (x // m) * m


def _vmem_capacity_bytes(default=64 << 20):
    """Physical VMEM bytes of the attached TPU; conservative 64 MiB fallback."""
    try:
        cap = getattr(pltpu.get_tpu_info(), "vmem_capacity_bytes", None)
        if cap:
            return int(cap)
    except Exception:
        pass
    return default


def feature_stacking(input1, input2):
    """Pallas implementation of FeatureStacking.forward.

    input1, input2: arrays of identical shape/dtype, e.g. [B, S, H].
    Returns: elementwise maximum with the same shape.
    """
    assert input1.shape == input2.shape
    assert input1.dtype == input2.dtype

    orig_shape = input1.shape
    dtype = input1.dtype
    itemsize = jnp.dtype(dtype).itemsize
    total = int(math.prod(orig_shape)) if orig_shape else 1

    # ---- per-generation tile byte budget ------------------------------------
    vmem_cap = _vmem_capacity_bytes()
    # ~4 MiB/array on v7x (64 MiB VMEM), ~8 MiB/array on v5e/v6e (128 MiB VMEM).
    target_tile_bytes = min(8 << 20, max(2 << 20, vmem_cap // 16))

    cost = pl.CostEstimate(
        flops=total, transcendentals=0, bytes_accessed=3 * total * itemsize
    )

    # ---- pick a lane width that divides total exactly (no pad, free reshape) --
    lanes = None
    for cand in (1024, 512, 256, 128):
        if total % cand == 0:
            lanes = cand
            break

    if lanes is not None:
        rows = total // lanes
        a2 = input1.reshape(rows, lanes)
        b2 = input2.reshape(rows, lanes)

        # Rows per step from the byte budget; multiple of 32 is a legal sublane
        # count for every dtype packing (f32:8, bf16:16, int8/fp8:32).
        tile_rows = max(32, _round_down(target_tile_bytes // (lanes * itemsize), 32))
        if tile_rows >= rows:
            tile_rows = rows  # single full-extent block (always legal)

        # Guarantee >= 2 grid steps for slabs > 1 MiB so v7x megacore can shard
        # the "parallel" axis across both TensorCores.
        slab_bytes = rows * lanes * itemsize
        if slab_bytes > (1 << 20) and tile_rows >= rows:
            half = _round_up(pl.cdiv(rows, 2), 32)
            if half < rows:
                tile_rows = half

        grid = (pl.cdiv(rows, tile_rows),)
        blk = pl.BlockSpec((tile_rows, lanes), lambda i: (i, 0))

        tile_bytes = tile_rows * lanes * itemsize
        # 2 inputs + 1 output, double-buffered, + headroom; capped per chip.
        vmem_limit_bytes = min(
            max(3 * 2 * tile_bytes + (2 << 20), 16 << 20),
            int(0.75 * vmem_cap),
        )

        out2 = pl.pallas_call(
            _feature_stacking_kernel,
            out_shape=jax.ShapeDtypeStruct((rows, lanes), dtype),
            grid_spec=pl.GridSpec(grid=grid, in_specs=[blk, blk], out_specs=blk),
            compiler_params=pltpu.CompilerParams(
                dimension_semantics=("parallel",),
                vmem_limit_bytes=vmem_limit_bytes,
            ),
            cost_estimate=cost,
        )(a2, b2)
        return out2.reshape(orig_shape)

    # ---- rare fallback: total not a multiple of 128 --------------------------
    # 1D BlockSpec with a 128-multiple block size; Pallas masks the partial
    # last block (padded reads, in-bounds writes) — no materialized padding.
    a1 = input1.reshape(-1)
    b1 = input2.reshape(-1)
    max_block = max(1024, _round_down(target_tile_bytes // itemsize, 1024))
    if total <= max_block:
        block = total  # full-extent block (always legal)
    else:
        block = max_block
    grid = (pl.cdiv(total, block),)
    blk = pl.BlockSpec((block,), lambda i: (i,))

    tile_bytes = block * itemsize
    vmem_limit_bytes = min(
        max(3 * 2 * tile_bytes + (2 << 20), 16 << 20),
        int(0.75 * vmem_cap),
    )

    out1 = pl.pallas_call(
        _feature_stacking_kernel,
        out_shape=jax.ShapeDtypeStruct((total,), dtype),
        grid_spec=pl.GridSpec(grid=grid, in_specs=[blk, blk], out_specs=blk),
        compiler_params=pltpu.CompilerParams(
            dimension_semantics=("parallel",),
            vmem_limit_bytes=vmem_limit_bytes,
        ),
        cost_estimate=cost,
    )(a1, b1)
    return out1.reshape(orig_shape)


if __name__ == "__main__":
    # Small shapes consistent with the module: batch=2, seq=8, hidden=32.
    B, S, H = 2, 8, 32
    key = jax.random.PRNGKey(0)
    k1, k2 = jax.random.split(key)
    input1 = jax.random.normal(k1, (B, S, H), dtype=jnp.float32)
    input2 = jax.random.normal(k2, (B, S, H), dtype=jnp.float32)

    out = feature_stacking(input1, input2)
    out = jax.block_until_ready(out)

    # Reference check against pure-JAX semantics of the PyTorch module.
    ref = jnp.max(jnp.stack([input1, input2], axis=3), axis=3)
    assert out.shape == (B, S, H)
    assert jnp.allclose(out, ref), "mismatch vs reference"

    print("KERNEL_OK")
</pallas_src>

<mosaic_0001>
module attributes {stable_mosaic.version = 11 : i64} {
  func.func @_feature_stacking_kernel(%arg0: i32, %arg1: memref<1x512xf32, #tpu.memory_space<vmem>>, %arg2: memref<1x512xf32, #tpu.memory_space<vmem>>, %arg3: memref<1x512xf32, #tpu.memory_space<vmem>>) attributes {dimension_semantics = [#tpu.dimension_semantics<parallel>], iteration_bounds = array<i64: 1>, scalar_prefetch = 0 : i64, scratch_operands = 0 : i64, tpu.core_type = #tpu.core_type<tc>, window_params = [{transform_indices = @transform_0, window_bounds = array<i64: 1, 512>}, {transform_indices = @transform_1, window_bounds = array<i64: 1, 512>}, {transform_indices = @transform_2, window_bounds = array<i64: 1, 512>}]} {
    %c0 = arith.constant 0 : index
    %c0_0 = arith.constant 0 : index
    %0 = vector.load %arg1[%c0, %c0_0] : memref<1x512xf32, #tpu.memory_space<vmem>>, vector<1x512xf32>
    %c0_1 = arith.constant 0 : index
    %c0_2 = arith.constant 0 : index
    %1 = vector.load %arg2[%c0_1, %c0_2] : memref<1x512xf32, #tpu.memory_space<vmem>>, vector<1x512xf32>
    %2 = arith.maximumf %0, %1 : vector<1x512xf32>
    %c0_3 = arith.constant 0 : index
    %c0_4 = arith.constant 0 : index
    %3 = vector.load %arg3[%c0_3, %c0_4] : memref<1x512xf32, #tpu.memory_space<vmem>>, vector<1x512xf32>
    tpu.vector_store %arg3[%c0_3, %c0_4], %2 {strides = array<i32>} : memref<1x512xf32, #tpu.memory_space<vmem>>, vector<1x512xf32>,
    return
  }
  func.func @transform_0(%arg0: i32) -> (i32, i32) {
    %c0_i32 = arith.constant 0 : i32
    %c0_i32_0 = arith.constant 0 : i32
    return %arg0, %c0_i32 : i32, i32
  }
  func.func @transform_1(%arg0: i32) -> (i32, i32) {
    %c0_i32 = arith.constant 0 : i32
    %c0_i32_0 = arith.constant 0 : i32
    return %arg0, %c0_i32 : i32, i32
  }
  func.func @transform_2(%arg0: i32) -> (i32, i32) {
    %c0_i32 = arith.constant 0 : i32
    %c0_i32_0 = arith.constant 0 : i32
    return %arg0, %c0_i32 : i32, i32
  }
}

</mosaic_0001>

<llo_original>
// kernel: tpu_custom_call.1
$region0: #{tpu_custom_call.1}
  #allocation0 [shape = 'u32[]', space=smem, size = 0x4, offset = 0x4, fixed_abs, tag = 'smem constant byte address 0x4 - core index']
  #allocation1 [shape = 'u32[144,128]{1,0:T(1,128)}', space=vmem, size = 0x12000, scoped, tag = 'internal scratch']
  %s0 = inlined_call_operand.hbm [shape: f32[1,512], index: 0, kind: input, shape index: {}]
  %s1 = inlined_call_operand.hbm [shape: f32[1,512], index: 1, kind: input, shape index: {}]
  %s2 = inlined_call_operand.hbm [shape: f32[1,512], index: 2, kind: output, shape index: {}]
  %s3 = sld [smem:[#allocation0]]
  $region26: #{tpu_custom_call.1} parent=0
    _
  %s5 = ssub.s32 1, %s3
  %s6 = scalar_select 0, %s5, %s3
  $region1: #{tpu_custom_call.1} parent=0
    #allocation2 [shape = 'u8[2048]{0}', space=vmem, size = 0x800, scoped, tag = 'input window, operand 0, single buffered']
    #allocation3 [shape = 's32[1]{0}', space=sflag, size = 0x4, scoped, tag = 'scoped memory for tpu_custom_call.1']
    #allocation4 [shape = 's32[1]{0}', space=sflag, size = 0x4, scoped, tag = 'scoped memory for tpu_custom_call.1']
    #allocation5 [shape = 'u8[2048]{0}', space=vmem, size = 0x800, scoped, tag = 'input window, operand 1, single buffered']
    #allocation6 [shape = 's32[1]{0}', space=sflag, size = 0x4, scoped, tag = 'scoped memory for tpu_custom_call.1']
    #allocation7 [shape = 'u8[2048]{0}', space=vmem, size = 0x800, scoped, tag = 'output window, operand 0, single buffered']
    %7 = vsyncpa [#allocation3], 0
    %8 = vsyncpa [#allocation6], 0
    %9 = vsyncpa [#allocation4], 0
    // Predicated region
    $region2: #{tpu_custom_call.1} parent=1 // pred_check
      _
    $region3: #{tpu_custom_call.1} parent=1 // pred_check_branch
      %11 = sbr.rel (0) target = $region5
    $region4: #{tpu_custom_call.1} parent=1 // pred_region
      %s13 = ssub.s32 64, 64
      %14 = vsyncadd [#allocation3], %s13
      %s16 = sshll.u32 [#allocation2], 4
      %s17 = int_to_ptr.vmem [resolvable:$true] %s16
      %19 = dma.hbm_to_vmem [thread:$0]  %s0, 64, %s17, [#allocation3]
    $region5: #{tpu_custom_call.1} parent=1 // pred_fallthru
      _
    // Predicated region
    $region6: #{tpu_custom_call.1} parent=1 // pred_check
      _
    $region7: #{tpu_custom_call.1} parent=1 // pred_check_branch
      %21 = sbr.rel (0) target = $region9
    $region8: #{tpu_custom_call.1} parent=1 // pred_region
      %s23 = ssub.s32 64, 64
      %24 = vsyncadd [#allocation6], %s23
      %s26 = sshll.u32 [#allocation5], 4
      %s27 = int_to_ptr.vmem [resolvable:$true] %s26
      %29 = dma.hbm_to_vmem [thread:$0]  %s1, 64, %s27, [#allocation6]
    $region9: #{tpu_custom_call.1} parent=1 // pred_fallthru
      _
    // Predicated region
    $region10: #{tpu_custom_call.1} parent=1 // pred_check
      _
    $region11: #{tpu_custom_call.1} parent=1 // pred_check_branch
      %31 = sbr.rel (0) target = $region13
    $region12: #{tpu_custom_call.1} parent=1 // pred_region
      %32 = dma.done [#allocation3], 64
    $region13: #{tpu_custom_call.1} parent=1 // pred_fallthru
      _
    // Predicated region
    $region14: #{tpu_custom_call.1} parent=1 // pred_check
      _
    $region15: #{tpu_custom_call.1} parent=1 // pred_check_branch
      %34 = sbr.rel (0) target = $region17
    $region16: #{tpu_custom_call.1} parent=1 // pred_region
      %35 = dma.done [#allocation6], 64
    $region17: #{tpu_custom_call.1} parent=1 // pred_fallthru
      _
    %v36 = vld [vmem:[#allocation2] sm:$0xf]
    %v37 = vld [vmem:[#allocation5] sm:$0xf]
    %v38 = vmax.f32 %v36, %v37
    %v39 = vlaneseq
    %vm40 = vcmp.ge.s32.totalorder %v39, 0
    %vm41 = vcmp.lt.s32.totalorder %v39, 512
    %vm42 = vmand %vm40, %vm41
    %43 = vst.msk [vmem:[#allocation7] sm:$0xf] %vm42, %v38
    // Predicated region
    $region18: #{tpu_custom_call.1} parent=1 // pred_check
      _
    $region19: #{tpu_custom_call.1} parent=1 // pred_check_branch
      %45 = sbr.rel (0) target = $region21
    $region20: #{tpu_custom_call.1} parent=1 // pred_region
      %s47 = ssub.s32 64, 64
      %48 = vsyncadd [#allocation4], %s47
      %s50 = sshll.u32 [#allocation7], 4
      %s51 = int_to_ptr.vmem [resolvable:$true] %s50
      %53 = dma.vmem_to_hbm [thread:$0]  %s51, 64, %s2, [#allocation4]
    $region21: #{tpu_custom_call.1} parent=1 // pred_fallthru
      _
    // Predicated region
    $region22: #{tpu_custom_call.1} parent=1 // pred_check
      _
    $region23: #{tpu_custom_call.1} parent=1 // pred_check_branch
      %55 = sbr.rel (0) target = $region25
    $region24: #{tpu_custom_call.1} parent=1 // pred_region
      %56 = dma.done [#allocation4], 64
    $region25: #{tpu_custom_call.1} parent=1 // pred_fallthru
      _
    %57 = vsyncpa [#allocation3], 1
    %58 = vsyncpa [#allocation6], 1
    %59 = vsyncpa [#allocation4], 1

</llo_original>
